<compile_context>
chip_gen: v6e
topology: v6e:2x2x1
jax: 0.10.0
libtpu: 0.0.40
codegen_flags: <defaults>
</compile_context>

<pallas_src>
import numpy as np
import jax
import jax.numpy as jnp
from jax import lax
from jax.experimental import pallas as pl
from jax.experimental.pallas import tpu as pltpu


_VMEM_LIMIT_BYTES = 32 * 1024 * 1024   # >= default scoped VMEM on all generations


def _round_up(x, m):
    return ((x + m - 1) // m) * m


def _choose_tile_n(n, d):
    """Largest row tile whose double-buffered f32 input fits ~12 MiB of VMEM."""
    bytes_per_row = d * 4
    data_budget = 12 * 1024 * 1024
    max_tile = data_budget // (2 * bytes_per_row)     # 2x for double-buffering
    max_tile = min(2048, max_tile)
    max_tile = max(128, (max_tile // 128) * 128)      # lane-dense when tiled
    if n <= max_tile:
        return _round_up(max(n, 8), 8)                # single block
    return max_tile


# ---------------------------------------------------------------------------
# Kernel 1: pivoted column sums + Gram matrix, accumulated over row tiles.
# Grid = (num_splits, steps): leading axis is "parallel" (per-core partials on
# v7x), trailing axis is the serial accumulation over row blocks.
# ---------------------------------------------------------------------------
def _stats_kernel(x_ref, pivot_ref, sum_ref, gram_ref):
    @pl.when(pl.program_id(1) == 0)
    def _():
        sum_ref[...] = jnp.zeros_like(sum_ref)
        gram_ref[...] = jnp.zeros_like(gram_ref)

    xp = x_ref[...] - pivot_ref[...]                  # (tile_n, d)
    sum_ref[...] += jnp.sum(xp, axis=0, keepdims=True)[None]          # (1, 1, d)
    gram_ref[...] += lax.dot_general(
        xp, xp,
        dimension_numbers=(((0,), (0,)), ((), ())),   # contract rows: xp^T @ xp
        preferred_element_type=jnp.float32,
    )[None]                                           # (1, d, d)


def compute_stats(x_pad, pivot, *, tile_n, num_splits):
    n_pad, d = x_pad.shape
    steps = n_pad // (tile_n * num_splits)
    sums, grams = pl.pallas_call(
        _stats_kernel,
        out_shape=(
            jax.ShapeDtypeStruct((num_splits, 1, d), jnp.float32),
            jax.ShapeDtypeStruct((num_splits, d, d), jnp.float32),
        ),
        grid_spec=pltpu.PrefetchScalarGridSpec(
            num_scalar_prefetch=0,
            grid=(num_splits, steps),
            in_specs=[
                pl.BlockSpec((tile_n, d), lambda c, i: (c * steps + i, 0)),
                pl.BlockSpec((1, d), lambda c, i: (0, 0)),
            ],
            out_specs=(
                pl.BlockSpec((1, 1, d), lambda c, i: (c, 0, 0)),
                pl.BlockSpec((1, d, d), lambda c, i: (c, 0, 0)),
            ),
        ),
        compiler_params=pltpu.CompilerParams(
            dimension_semantics=("parallel", "arbitrary"),
            vmem_limit_bytes=_VMEM_LIMIT_BYTES,
        ),
    )(x_pad, pivot)
    # Tiny cross-core reduction in plain JAX.
    return jnp.sum(sums, axis=0), jnp.sum(grams, axis=0)   # (1, d), (d, d)


# ---------------------------------------------------------------------------
# Kernel 2: lane-dense projection  (W^T X^T), output shape (k, n_pad).
# Mean offset is folded out (subtracted on the small result in the wrapper).
# ---------------------------------------------------------------------------
def _project_kernel(x_ref, wt_ref, out_ref):
    # wt: (k, d), x: (tile_n, d)  ->  out: (k, tile_n) = (x @ w)^T
    out_ref[...] = lax.dot_general(
        wt_ref[...], x_ref[...],
        dimension_numbers=(((1,), (1,)), ((), ())),
        preferred_element_type=jnp.float32,
    )


def project(x_pad, wt, *, tile_n):
    n_pad, d = x_pad.shape
    k = wt.shape[0]
    grid = (n_pad // tile_n,)
    return pl.pallas_call(
        _project_kernel,
        out_shape=jax.ShapeDtypeStruct((k, n_pad), jnp.float32),
        grid_spec=pltpu.PrefetchScalarGridSpec(
            num_scalar_prefetch=0,
            grid=grid,
            in_specs=[
                pl.BlockSpec((tile_n, d), lambda i: (i, 0)),
                pl.BlockSpec((k, d), lambda i: (0, 0)),
            ],
            out_specs=pl.BlockSpec((k, tile_n), lambda i: (0, i)),
        ),
        compiler_params=pltpu.CompilerParams(
            dimension_semantics=("parallel",),
            vmem_limit_bytes=_VMEM_LIMIT_BYTES,
        ),
    )(x_pad, wt)


# ---------------------------------------------------------------------------
# Full forward: PCA fit_transform + outlier mask (ConvexHull left as TODO).
# ---------------------------------------------------------------------------
def pca_forward(x, n_components=2):
    x = x.astype(jnp.float32)
    n, d = x.shape

    tile_n = _choose_tile_n(n, d)
    num_blocks = _round_up(n, tile_n) // tile_n
    num_splits = 2 if num_blocks >= 2 else 1          # split stats across v7x's 2 TCs
    n_pad = _round_up(n, tile_n * num_splits)

    pivot = x[:1]                                     # numerical pivot (first row)
    if n_pad > n:
        # Pad with copies of the pivot so padded rows contribute exactly 0 to stats.
        x_pad = jnp.concatenate(
            [x, jnp.broadcast_to(pivot, (n_pad - n, d))], axis=0)
    else:
        x_pad = x

    # --- fit: pivoted statistics via Pallas ---
    sum_p, gram_p = compute_stats(x_pad, pivot, tile_n=tile_n, num_splits=num_splits)
    mean_p = sum_p / jnp.float32(n)                   # (1, d) mean of (x - pivot)
    scatter = gram_p - jnp.float32(n) * (mean_p.T @ mean_p)
    cov = scatter / jnp.float32(max(n - 1, 1))
    mean = pivot + mean_p                             # (1, d) true column mean

    # small (D, D) eigendecomposition — glue, not the hot path
    eigvals, eigvecs = jnp.linalg.eigh(cov)           # ascending
    order = jnp.argsort(eigvals)[::-1][:n_components]
    comps = eigvecs[:, order]                         # (d, k)
    # deterministic sign fix (mimics sklearn's svd_flip convention on V)
    max_idx = jnp.argmax(jnp.abs(comps), axis=0)
    signs = jnp.sign(comps[max_idx, jnp.arange(n_components)])
    signs = jnp.where(signs == 0, 1.0, signs)
    comps = comps * signs[None, :]

    # --- transform: lane-dense projection via Pallas, mean folded out ---
    wt = comps.T.astype(jnp.float32)                  # (k, d)
    proj_t = project(x_pad, wt, tile_n=tile_n)        # (k, n_pad)
    pts = proj_t[:, :n].T - (mean @ comps)            # (n, k) = (X - mean) @ W

    # --- remove_outliers (percentile bounds, same math as reference) ---
    q1 = jnp.percentile(pts, 5.0, axis=0)
    q3 = jnp.percentile(pts, 95.0, axis=0)
    iqr = q3 - q1
    lower = q1 - 1.5 * iqr
    upper = q3 + 1.5 * iqr
    mask = (
        (pts[:, 0] >= lower[0]) & (pts[:, 0] <= upper[0]) &
        (pts[:, 1] >= lower[1]) & (pts[:, 1] <= upper[1])
    )
    return pts, mask


if __name__ == "__main__":
    key = jax.random.PRNGKey(0)
    N, D = 64, 32  # small data-matrix shape (n_samples, n_features)
    x = jax.random.normal(key, (N, D), dtype=jnp.float32) + 5.0  # nonzero mean

    pts, mask = pca_forward(x, n_components=2)
    pts = jax.block_until_ready(pts)
    mask = jax.block_until_ready(mask)

    # sanity check vs numpy (sign/order-invariant): projected variances should
    # match the top-2 eigenvalues of the sample covariance of x.
    x_np = np.asarray(x, dtype=np.float64)
    ev = np.sort(np.linalg.eigvalsh(np.cov(x_np, rowvar=False)))[::-1][:2]
    var = np.sort(np.asarray(pts, dtype=np.float64).var(axis=0, ddof=1))[::-1]
    assert np.allclose(var, ev, rtol=1e-3, atol=1e-4), (var, ev)

    # dynamic-shape filtering done host-side (matches boolean-mask indexing)
    filtered = np.asarray(pts)[np.asarray(mask)]
    # TODO(synk): scipy.spatial.ConvexHull has no Pallas equivalent (sequential
    # geometric algorithm); hull construction is intentionally omitted.

    assert filtered.ndim == 2 and filtered.shape[1] == 2
    assert np.all(np.isfinite(filtered))
    print("KERNEL_OK")
</pallas_src>

<mosaic_0001>
module attributes {stable_mosaic.version = 11 : i64} {
  func.func @_stats_kernel(%arg0: i32, %arg1: i32, %arg2: memref<64x32xf32, #tpu.memory_space<vmem>>, %arg3: memref<1x32xf32, #tpu.memory_space<vmem>>, %arg4: memref<1x1x32xf32, #tpu.memory_space<vmem>>, %arg5: memref<1x32x32xf32, #tpu.memory_space<vmem>>) attributes {dimension_semantics = [#tpu.dimension_semantics<parallel>, #tpu.dimension_semantics<arbitrary>], iteration_bounds = array<i64: 1, 1>, scalar_prefetch = 0 : i64, scratch_operands = 0 : i64, tpu.core_type = #tpu.core_type<tc>, window_params = [{transform_indices = @transform_0, window_bounds = array<i64: 64, 32>}, {pipeline_mode = #tpu.pipeline_mode<synchronous>, transform_indices = @transform_1, window_bounds = array<i64: 1, 32>}, {transform_indices = @transform_2, window_bounds = array<i64: 1, 1, 32>}, {transform_indices = @transform_3, window_bounds = array<i64: 1, 32, 32>}]} {
    %c0_i32 = arith.constant 0 : i32
    %0 = arith.cmpi eq, %arg1, %c0_i32 : i32
    %1 = arith.extui %0 : i1 to i32
    %c0_i32_0 = arith.constant 0 : i32
    %2 = arith.cmpi ne, %1, %c0_i32_0 : i32
    scf.if %2 {
      %cst_17 = arith.constant 0.000000e+00 : f32
      %18 = vector.broadcast %cst_17 : f32 to vector<1x1x32xf32>
      %c0_18 = arith.constant 0 : index
      %c0_19 = arith.constant 0 : index
      %c0_20 = arith.constant 0 : index
      %19 = vector.load %arg4[%c0_18, %c0_19, %c0_20] : memref<1x1x32xf32, #tpu.memory_space<vmem>>, vector<1x1x32xf32>
      tpu.vector_store %arg4[%c0_18, %c0_19, %c0_20], %18 {strides = array<i32>} : memref<1x1x32xf32, #tpu.memory_space<vmem>>, vector<1x1x32xf32>,
      %cst_21 = arith.constant 0.000000e+00 : f32
      %20 = vector.broadcast %cst_21 : f32 to vector<1x32x32xf32>
      %c0_22 = arith.constant 0 : index
      %c0_23 = arith.constant 0 : index
      %c0_24 = arith.constant 0 : index
      %21 = vector.load %arg5[%c0_22, %c0_23, %c0_24] : memref<1x32x32xf32, #tpu.memory_space<vmem>>, vector<1x32x32xf32>
      tpu.vector_store %arg5[%c0_22, %c0_23, %c0_24], %20 {strides = array<i32>} : memref<1x32x32xf32, #tpu.memory_space<vmem>>, vector<1x32x32xf32>,
    } else {
    }
    %c0 = arith.constant 0 : index
    %c0_1 = arith.constant 0 : index
    %3 = vector.load %arg2[%c0, %c0_1] : memref<64x32xf32, #tpu.memory_space<vmem>>, vector<64x32xf32>
    %c0_2 = arith.constant 0 : index
    %c0_3 = arith.constant 0 : index
    %4 = vector.load %arg3[%c0_2, %c0_3] : memref<1x32xf32, #tpu.memory_space<vmem>>, vector<1x32xf32>
    %5 = vector.broadcast %4 : vector<1x32xf32> to vector<64x32xf32>
    %6 = arith.subf %3, %5 : vector<64x32xf32>
    %c0_4 = arith.constant 0 : index
    %c0_5 = arith.constant 0 : index
    %c0_6 = arith.constant 0 : index
    %7 = vector.load %arg4[%c0_4, %c0_5, %c0_6] : memref<1x1x32xf32, #tpu.memory_space<vmem>>, vector<1x1x32xf32>
    %cst = arith.constant dense<0.000000e+00> : vector<32xf32>
    %8 = vector.multi_reduction <add>, %6, %cst [0] : vector<64x32xf32> to vector<32xf32>
    %9 = vector.shape_cast %8 : vector<32xf32> to vector<1x32xf32>
    %10 = vector.shape_cast %9 : vector<1x32xf32> to vector<1x1x32xf32>
    %11 = arith.addf %7, %10 : vector<1x1x32xf32>
    %c0_7 = arith.constant 0 : index
    %c0_8 = arith.constant 0 : index
    %c0_9 = arith.constant 0 : index
    %12 = vector.load %arg4[%c0_7, %c0_8, %c0_9] : memref<1x1x32xf32, #tpu.memory_space<vmem>>, vector<1x1x32xf32>
    tpu.vector_store %arg4[%c0_7, %c0_8, %c0_9], %11 {strides = array<i32>} : memref<1x1x32xf32, #tpu.memory_space<vmem>>, vector<1x1x32xf32>,
    %c0_10 = arith.constant 0 : index
    %c0_11 = arith.constant 0 : index
    %c0_12 = arith.constant 0 : index
    %13 = vector.load %arg5[%c0_10, %c0_11, %c0_12] : memref<1x32x32xf32, #tpu.memory_space<vmem>>, vector<1x32x32xf32>
    %cst_13 = arith.constant dense<0.000000e+00> : vector<32x32xf32>
    %14 = tpu.matmul %6, %6, %cst_13 {dimension_numbers = #tpu.dot_dimension_numbers<[0], [0], [1], [1], [0, 1, 1, 1], [], []>} : vector<64x32xf32>, vector<64x32xf32>, vector<32x32xf32> -> vector<32x32xf32>
    %15 = vector.shape_cast %14 : vector<32x32xf32> to vector<1x32x32xf32>
    %16 = arith.addf %13, %15 : vector<1x32x32xf32>
    %c0_14 = arith.constant 0 : index
    %c0_15 = arith.constant 0 : index
    %c0_16 = arith.constant 0 : index
    %17 = vector.load %arg5[%c0_14, %c0_15, %c0_16] : memref<1x32x32xf32, #tpu.memory_space<vmem>>, vector<1x32x32xf32>
    tpu.vector_store %arg5[%c0_14, %c0_15, %c0_16], %16 {strides = array<i32>} : memref<1x32x32xf32, #tpu.memory_space<vmem>>, vector<1x32x32xf32>,
    return
  }
  func.func @transform_0(%arg0: i32, %arg1: i32) -> (i32, i32) {
    %c1_i32 = arith.constant 1 : i32
    %0 = arith.muli %arg0, %c1_i32 : i32
    %1 = arith.addi %0, %arg1 : i32
    %c0_i32 = arith.constant 0 : i32
    %c0_i32_0 = arith.constant 0 : i32
    return %1, %c0_i32 : i32, i32
  }
  func.func @transform_1(%arg0: i32, %arg1: i32) -> (i32, i32) {
    %c0_i32 = arith.constant 0 : i32
    %c0_i32_0 = arith.constant 0 : i32
    %c0_i32_1 = arith.constant 0 : i32
    return %c0_i32, %c0_i32_0 : i32, i32
  }
  func.func @transform_2(%arg0: i32, %arg1: i32) -> (i32, i32, i32) {
    %c0_i32 = arith.constant 0 : i32
    %c0_i32_0 = arith.constant 0 : i32
    %c0_i32_1 = arith.constant 0 : i32
    return %arg0, %c0_i32, %c0_i32_0 : i32, i32, i32
  }
  func.func @transform_3(%arg0: i32, %arg1: i32) -> (i32, i32, i32) {
    %c0_i32 = arith.constant 0 : i32
    %c0_i32_0 = arith.constant 0 : i32
    %c0_i32_1 = arith.constant 0 : i32
    return %arg0, %c0_i32, %c0_i32_0 : i32, i32, i32
  }
}

</mosaic_0001>

<llo_original>
// kernel: tpu_custom_call.1
$region0: #{tpu_custom_call.1}
  #allocation0 [shape = 'u32[]', space=smem, size = 0x4, offset = 0x4, fixed_abs, tag = 'smem constant byte address 0x4 - core index']
  #allocation1 [shape = 'u32[144,128]{1,0:T(1,128)}', space=vmem, size = 0x12000, scoped, tag = 'internal scratch']
  %s0 = inlined_call_operand.vmem [shape: f32[64,32], index: 0, kind: input, shape index: {}]
  %s1 = inlined_call_operand.vmem [shape: f32[1,32], index: 1, kind: input, shape index: {}]
  %s2 = inlined_call_operand.hbm [shape: f32[1,1,32], index: 2, kind: output, shape index: {0}]
  %s3 = inlined_call_operand.hbm [shape: f32[1,32,32], index: 3, kind: output, shape index: {1}]
  %4 = xla_tuple %s2, %s3
  %s5 = sld [smem:[#allocation0]]
  $region30: #{tpu_custom_call.1} parent=0
    _
  %s7 = ssub.s32 1, %s5
  %s8 = scalar_select 0, %s7, %s5
  $region1: #{tpu_custom_call.1} parent=0
    #allocation2 [shape = 'u8[512]{0}', space=vmem, size = 0x400, scoped, tag = 'output window, operand 0, single buffered']
    #allocation3 [shape = 's32[1]{0}', space=sflag, size = 0x4, scoped, tag = 'scoped memory for tpu_custom_call.1']
    #allocation4 [shape = 'u8[16384]{0}', space=vmem, size = 0x4000, scoped, tag = 'output window, operand 1, single buffered']
    #allocation5 [shape = 's32[1]{0}', space=sflag, size = 0x4, scoped, tag = 'scoped memory for tpu_custom_call.1']
    %9 = vsyncpa [#allocation3], 0
    %10 = vsyncpa [#allocation5], 0
    // Predicated region
    $region2: #{tpu_custom_call.1} parent=1 // pred_check
      _
    $region3: #{tpu_custom_call.1} parent=1 // pred_check_branch
      %12 = sbr.rel (0) target = $region5
    $region4: #{tpu_custom_call.1} parent=1 // pred_region
      %s13 = sadd.s32 0, 0
      %s14 = smul.u32 8, %s13
      %p15 = scmp.lt.s32.totalorder %s14, 7
      %s16 = scalar_select %p15, %s14, 7
      %s17 = smul.addr %s16, 8
      %s18 = scalar_lea.vmem %s0, %s17
      %s19 = sadd.s32 0, 0
      %s20 = smul.u32 8, %s19
    $region5: #{tpu_custom_call.1} parent=1 // pred_fallthru
      _
    // Predicated region
    $region6: #{tpu_custom_call.1} parent=1 // pred_check
      _
    $region7: #{tpu_custom_call.1} parent=1 // pred_check_branch
      %22 = sbr.rel (0) target = $region9
    $region8: #{tpu_custom_call.1} parent=1 // pred_region
      _
    $region9: #{tpu_custom_call.1} parent=1 // pred_fallthru
      _
    %s23 = sadd.s32 0, 0
    %s24 = smul.u32 8, %s23
    %p25 = scmp.lt.s32.totalorder %s24, 7
    %s26 = scalar_select %p25, %s24, 7
    %s27 = smul.addr %s26, 8
    %s28 = scalar_lea.vmem %s0, %s27
    %s29 = sadd.s32 0, 0
    %s30 = smul.u32 8, %s29
    %p31 = scmp.lt.s32.totalorder %s30, 7
    %s32 = scalar_select %p31, %s30, 7
    %s33 = smul.addr %s32, 8
    %s34 = scalar_lea.vmem %s0, %s33
    %s35 = sadd.s32 0, 0
    %s36 = smul.u32 8, %s35
    %p37 = scmp.eq.s32.totalorder 0, 0
    // Predicated region
    $region10: #{tpu_custom_call.1} parent=1 // pred_check
      %p38 = pneg %p37
    $region11: #{tpu_custom_call.1} parent=1 // pred_check_branch
      %40 = sbr.rel (%p38) target = $region13
    $region12: #{tpu_custom_call.1} parent=1 // pred_region
      %vm41 = vcmask 253952
      %42 = vst.msk [vmem:[#allocation2] sm:$0x1] %vm41, 0.0
      %vm43 = vcmask 261120
      %44 = vst.msk [vmem:[#allocation4] sm:$0xff] %vm43, 0.0
      %45 = vst.msk [vmem:[#allocation4 + $0x8] sm:$0xff] %vm43, 0.0
      %46 = vst.msk [vmem:[#allocation4 + $0x10] sm:$0xff] %vm43, 0.0
      %47 = vst.msk [vmem:[#allocation4 + $0x18] sm:$0xff] %vm43, 0.0
    $region13: #{tpu_custom_call.1} parent=1 // pred_fallthru
      _
    %v48 = vld [vmem:[%s34] sm:$0xff]
    %v49 = vld [vmem:[%s34 + $0x8] sm:$0xff]
    %v50 = vld [vmem:[%s34 + $0x10] sm:$0xff]
    %v51 = vld [vmem:[%s34 + $0x18] sm:$0xff]
    %v52 = vld [vmem:[%s34 + $0x20] sm:$0xff]
    %v53 = vld [vmem:[%s34 + $0x28] sm:$0xff]
    %v54 = vld [vmem:[%s34 + $0x30] sm:$0xff]
    %v55 = vld [vmem:[%s34 + $0x38] sm:$0xff]
    %v56 = vld [vmem:[%s1] sm:$0x1]
    %v58 = vlaneseq
    %v59 = vshrl.u32 %v58, 7
    %v60 = vsub.s32 0, %v59
    %v61 = vrot.slane %v56, %v60
    %v63 = vsub.f32 %v48, %v61
    %v64 = vsub.f32 %v49, %v61
    %v65 = vsub.f32 %v50, %v61
    %v66 = vsub.f32 %v51, %v61
    %v67 = vsub.f32 %v52, %v61
    %v68 = vsub.f32 %v53, %v61
    %v69 = vsub.f32 %v54, %v61
    %v70 = vsub.f32 %v55, %v61
    %v71 = vld [vmem:[#allocation2] sm:$0x1]
    %vm72 = vcmask 261120
    %v73 = vsel %vm72, %v63, 0.0
    %v74 = vsel %vm72, %v64, 0.0
    %v75 = vadd.f32 %v73, %v74
    %v76 = vsel %vm72, %v65, 0.0
    %v77 = vadd.f32 %v75, %v76
    %v78 = vsel %vm72, %v66, 0.0
    %v79 = vadd.f32 %v77, %v78
    %v80 = vsel %vm72, %v67, 0.0
    %v81 = vadd.f32 %v79, %v80
    %v82 = vsel %vm72, %v68, 0.0
    %v83 = vadd.f32 %v81, %v82
    %v84 = vsel %vm72, %v69, 0.0
    %v85 = vadd.f32 %v83, %v84
    %v86 = vsel %vm72, %v70, 0.0
    %v87 = vadd.f32 %v85, %v86
    %v88 = vrot.slane %v87, 4
    %v89 = vadd.f32 %v87, %v88
    %v90 = vrot.slane %v89, 2
    %v91 = vadd.f32 %v89, %v90
    %v92 = vrot.slane %v91, 1
    %v93 = vadd.f32 %v91, %v92
    %v94 = vadd.f32 %v71, %v93
    %vm95 = vcmask 253952
    %96 = vst.msk [vmem:[#allocation2] sm:$0x1] %vm95, %v94
    %v97 = vld [vmem:[#allocation4] sm:$0xff]
    %v98 = vld [vmem:[#allocation4 + $0x8] sm:$0xff]
    %v99 = vld [vmem:[#allocation4 + $0x10] sm:$0xff]
    %v100 = vld [vmem:[#allocation4 + $0x18] sm:$0xff]
    %101 = vxpose.xlu0.b32.start [1/16] %v63, 128
    %102 = vxpose.xlu0.b32.cont [2/16] %v64, 128
    %103 = vxpose.xlu0.b32.cont [3/16] %v65, 128
    %104 = vxpose.xlu0.b32.cont [4/16] %v66, 128
    %105 = vxpose.xlu0.b32.cont [5/16] %v67, 128
    %106 = vxpose.xlu0.b32.cont [6/16] %v68, 128
    %107 = vxpose.xlu0.b32.cont [7/16] %v69, 128
    %108 = vxpose.xlu0.b32.cont [8/16] %v70, 128
    %109 = vxpose.xlu0.b32.cont [9/16] 0.0, 128
    %110 = vxpose.xlu0.b32.cont [10/16] 0.0, 128
    %111 = vxpose.xlu0.b32.cont [11/16] 0.0, 128
    %112 = vxpose.xlu0.b32.cont [12/16] 0.0, 128
    %113 = vxpose.xlu0.b32.cont [13/16] 0.0, 128
    %114 = vxpose.xlu0.b32.cont [14/16] 0.0, 128
    %115 = vxpose.xlu0.b32.cont [15/16] 0.0, 128
    %116 = vxpose.xlu0.b32.end [16/16] 0.0, 128
    %v117 = vpop.trf.xlu0
    %v118 = vpop.trf.xlu0
    %v119 = vpop.trf.xlu0
    %v120 = vpop.trf.xlu0
    %v121 = vpop.trf.xlu0
    %v122 = vpop.trf.xlu0
    %v123 = vpop.trf.xlu0
    %v124 = vpop.trf.xlu0
    %v125 = vpop.trf.xlu0
    %v126 = vpop.trf.xlu0
    %v127 = vpop.trf.xlu0
    %v128 = vpop.trf.xlu0
    %v129 = vpop.trf.xlu0
    %v130 = vpop.trf.xlu0
    %v131 = vpop.trf.xlu0
    %v132 = vpop.trf.xlu0
    %vm133 = vcmask 523264
    %v135 = vsel %vm133, %v117, 0
    %v138 = vsel %vm133, %v118, 0
    %v141 = vsel %vm133, %v119, 0
    %v144 = vsel %vm133, %v120, 0
    %146 = vmatprep.subr.mxu0 0.0
    %147 = vmatpush1.msra.mxu0 0.0
    %148 = vmatprep.subr.mxu0 0.0
    %149 = vmatpush1.msra.mxu0 0.0
    %150 = vmatprep.subr.mxu0 0.0
    %151 = vmatpush1.msra.mxu0 0.0
    %152 = vmatprep.subr.mxu0 0.0
    %153 = vmatpush1.msra.mxu0 0.0
    %154 = vmatprep.subr.mxu0 0.0
    %155 = vmatpush1.msra.mxu0 0.0
    %156 = vmatprep.subr.mxu0 0.0
    %157 = vmatpush1.msra.mxu0 0.0
    %158 = vmatprep.subr.mxu0 0.0
    %159 = vmatpush1.msra.mxu0 0.0
    %160 = vmatprep.subr.mxu0 0.0
    %161 = vmatpush1.msra.mxu0 0.0
    %162 = vmatprep.subr.mxu0 0.0
    %163 = vmatpush1.msra.mxu0 %v70
    %164 = vmatprep.subr.mxu0 0.0
    %165 = vmatpush1.msra.mxu0 %v69
    %166 = vmatprep.subr.mxu0 0.0
    %167 = vmatpush1.msra.mxu0 %v68
    %168 = vmatprep.subr.mxu0 0.0
    %169 = vmatpush1.msra.mxu0 %v67
    %170 = vmatprep.subr.mxu0 0.0
    %171 = vmatpush1.msra.mxu0 %v66
    %172 = vmatprep.subr.mxu0 0.0
    %173 = vmatpush1.msra.mxu0 %v65
    %174 = vmatprep.subr.mxu0 0.0
    %175 = vmatpush1.msra.mxu0 %v64
    %176 = vmatprep.subr.mxu0 0.0
    %177 = vmatpush1.msra.mxu0 %v63
    %178 = vmatprep.subr.mxu0 0.0
    %179 = vmatpush2.msra.mxu0 0.0
    %180 = vmatprep.subr.mxu0 0.0
    %181 = vmatpush2.msra.mxu0 0.0
    %182 = vmatprep.subr.mxu0 0.0
    %183 = vmatpush2.msra.mxu0 0.0
    %184 = vmatprep.subr.mxu0 0.0
    %185 = vmatpush2.msra.mxu0 0.0
    %186 = vmatprep.subr.mxu0 0.0
    %187 = vmatpush2.msra.mxu0 0.0
    %188 = vmatprep.subr.mxu0 0.0
    %189 = vmatpush2.msra.mxu0 0.0
    %190 = vmatprep.subr.mxu0 0.0
    %191 = vmatpush2.msra.mxu0 0.0
    %192 = vmatprep.subr.mxu0 0.0
    %193 = vmatpush2.msra.mxu0 0.0
    %194 = vmatprep.subr.mxu0 0.0
    %195 = vmatpush2.msra.mxu0 0.0
    %196 = vmatprep.subr.mxu0 0.0
    %197 = vmatpush2.msra.mxu0 0.0
    %198 = vmatprep.subr.mxu0 0.0
    %199 = vmatpush2.msra.mxu0 0.0
    %200 = vmatprep.subr.mxu0 0.0
    %201 = vmatpush2.msra.mxu0 0.0
    %202 = vmatprep.subr.mxu0 0.0
    %203 = vmatpush2.msra.mxu0 0.0
    %204 = vmatprep.subr.mxu0 0.0
    %205 = vmatpush2.msra.mxu0 0.0
    %206 = vmatprep.subr.mxu0 0.0
    %207 = vmatpush2.msra.mxu0 0.0
    %208 = vmatprep.subr.mxu0 0.0
    %209 = vmatpush2.msra.mxu0 0.0
    %210 = vmatprep.mubr.f32.mxu0 0.0
    %211 = vmatmul.mubr.f32.gmra.mxu0 %v135
    %v212 = vpop.f32.mrf.mxu0
    %v213 = vadd.f32 0.0, %v212
    %v214 = vpop.f32.mrf.mxu0
    %215 = vmatprep.mubr.f32.mxu0 0.0
    %216 = vmatmul.mubr.f32.gmra.mxu0 %v138
    %v217 = vpop.f32.mrf.mxu0
    %v218 = vadd.f32 0.0, %v217
    %v219 = vpop.f32.mrf.mxu0
    %220 = vmatprep.mubr.f32.mxu0 0.0
    %221 = vmatmul.mubr.f32.gmra.mxu0 %v141
    %v222 = vpop.f32.mrf.mxu0
    %v223 = vadd.f32 0.0, %v222
    %v224 = vpop.f32.mrf.mxu0
    %225 = vmatprep.mubr.f32.mxu0 0.0
    %226 = vmatmul.mubr.f32.gmra.mxu0 %v144
    %v227 = vpop.f32.mrf.mxu0
    %v228 = vadd.f32 0.0, %v227
    %v229 = vpop.f32.mrf.mxu0
    %230 = vdwg.mxu0
    %v231 = vadd.f32 %v97, %v213
    %v232 = vadd.f32 %v98, %v218
    %v233 = vadd.f32 %v99, %v223
    %v234 = vadd.f32 %v100, %v228
    %235 = vst.msk [vmem:[#allocation4] sm:$0xff] %vm72, %v231
    %236 = vst.msk [vmem:[#allocation4 + $0x8] sm:$0xff] %vm72, %v232
    %237 = vst.msk [vmem:[#allocation4 + $0x10] sm:$0xff] %vm72, %v233
    %238 = vst.msk [vmem:[#allocation4 + $0x18] sm:$0xff] %vm72, %v234
    // Predicated region
    $region14: #{tpu_custom_call.1} parent=1 // pred_check
      _
    $region15: #{tpu_custom_call.1} parent=1 // pred_check_branch
      %240 = sbr.rel (0) target = $region17
    $region16: #{tpu_custom_call.1} parent=1 // pred_region
      %s242 = ssub.s32 16, 16
      %243 = vsyncadd [#allocation3], %s242
      %s245 = sshll.u32 [#allocation2], 4
      %s246 = int_to_ptr.vmem [resolvable:$true] %s245
      %248 = dma.vmem_to_hbm [thread:$0]  %s246, 16, %s2, [#allocation3]
    $region17: #{tpu_custom_call.1} parent=1 // pred_fallthru
      _
    // Predicated region
    $region18: #{tpu_custom_call.1} parent=1 // pred_check
      _
    $region19: #{tpu_custom_call.1} parent=1 // pred_check_branch
      %250 = sbr.rel (0) target = $region21
    $region20: #{tpu_custom_call.1} parent=1 // pred_region
      %s252 = ssub.s32 512, 512
      %253 = vsyncadd [#allocation5], %s252
      %s254 = sshll.u32 [#allocation4], 4
      %s255 = int_to_ptr.vmem [resolvable:$true] %s254
      %260 = dma.vmem_to_hbm [thread:$0]  %s255, 512, %s3, [#allocation5], 128, 128, 8
    $region21: #{tpu_custom_call.1} parent=1 // pred_fallthru
      _
    // Predicated region
    $region22: #{tpu_custom_call.1} parent=1 // pred_check
      _
    $region23: #{tpu_custom_call.1} parent=1 // pred_check_branch
      %262 = sbr.rel (0) target = $region25
    $region24: #{tpu_custom_call.1} parent=1 // pred_region
      %263 = dma.done [#allocation3], 16
    $region25: #{tpu_custom_call.1} parent=1 // pred_fallthru
      _
    // Predicated region
    $region26: #{tpu_custom_call.1} parent=1 // pred_check
      _
    $region27: #{tpu_custom_call.1} parent=1 // pred_check_branch
      %265 = sbr.rel (0) target = $region29
    $region28: #{tpu_custom_call.1} parent=1 // pred_region
      %266 = dma.done [#allocation5], 512
    $region29: #{tpu_custom_call.1} parent=1 // pred_fallthru
      _
    %267 = vsyncpa [#allocation3], 1
    %268 = vsyncpa [#allocation5], 1

</llo_original>
